<compile_context>
chip_gen: v5e
topology: v5e:2x2
jax: 0.10.0
libtpu: 0.0.40
codegen_flags: <defaults>
</compile_context>

<pallas_src>
import functools

import jax
import jax.numpy as jnp
from jax.experimental import pallas as pl
from jax.experimental.pallas import tpu as pltpu

IN_DIM = 1024  # fixed by the module (ECFP fingerprint length)


def _round_up(x, m):
    return ((x + m - 1) // m) * m


def _pick_row_tile(B, tm):
    """Row tile: multiple of 32 sublanes (legal for int8/bf16 partial blocks);
    for B >= 64 cap at round_up(cdiv(B,2),32) so the grid has >= 2 steps and
    dimension_semantics=('parallel',) can shard across v7x's two TensorCores."""
    tm = max(32, (tm // 32) * 32)
    if B < 64:
        return B  # single full-extent block (always a legal block shape)
    half = _round_up((B + 1) // 2, 32)
    return min(tm, half)


def _encoder_kernel(x_ref, w1_ref, b1_ref, w2_ref, b2_ref, o_ref):
    # x_ref : (tm, 1024) bf16 or int8      w1_ref: (1024, H2p) bf16
    # b1_ref: (1, H2p) f32                 w2_ref: (H2p, H) bf16
    # b2_ref: (1, H) f32                   o_ref : (tm, H) float
    # bf16 input: astype is a trace-time no-op. int8 input: VPU cast, hidden
    # under the (4x smaller) input DMA; MXU still sees bf16 on all generations.
    x = x_ref[...].astype(jnp.bfloat16)
    h1 = jnp.dot(x, w1_ref[...], preferred_element_type=jnp.float32) + b1_ref[...]
    h1 = jnp.maximum(h1, 0.0)  # ReLU, f32, lane-dense (H2p multiple of 128)
    # Dropout(d): identity in eval mode (see TODO above).
    out = jnp.dot(h1.astype(jnp.bfloat16), w2_ref[...],
                  preferred_element_type=jnp.float32) + b2_ref[...]
    o_ref[...] = out.astype(o_ref.dtype)


@functools.partial(jax.jit, static_argnames=("tm",))
def fragment_ecfp_encoder(frp_batch, frp_masks, w1, b1, w2, b2, *, tm=1024):
    """Pallas implementation of FragmentEcfpEncoder.forward.

    frp_batch: [B, 1024]  float32 / bfloat16 / int8 / uint8 fingerprints.
               (bf16/int8 are exact for binary or small-count ECFP only.)
    frp_masks: passed through untouched (same as the PyTorch module).
    w1: [1024, 2h], b1: [2h], w2: [2h, h], b2: [h]
    Returns (encoded [B, h] float, frp_masks).
    """
    B, K = frp_batch.shape
    assert K == IN_DIM
    H2 = w1.shape[1]
    H = w2.shape[1]
    H2p = _round_up(H2, 128)  # lane-dense hidden width (padded with exact zeros)

    # ---- Input stream: keep it narrow in HBM (kernel is HBM-bandwidth bound).
    passthrough = (jnp.int8, jnp.uint8, jnp.bfloat16)
    if any(frp_batch.dtype == d for d in passthrough):
        x_in = frp_batch
    else:
        x_in = frp_batch.astype(jnp.bfloat16)

    out_dtype = (frp_batch.dtype
                 if jnp.issubdtype(frp_batch.dtype, jnp.floating)
                 else jnp.float32)

    # ---- Weights: bf16, H2 zero-padded to H2p, constant index_map (resident).
    w1_p = jnp.pad(w1, ((0, 0), (0, H2p - H2))).astype(jnp.bfloat16)
    b1_p = jnp.pad(b1, (0, H2p - H2)).reshape(1, H2p).astype(jnp.float32)
    w2_p = jnp.pad(w2, ((0, H2p - H2), (0, 0))).astype(jnp.bfloat16)
    b2_p = b2.reshape(1, H).astype(jnp.float32)

    # ---- Row tiling: no batch padding; ragged last block handled by Pallas.
    tm_eff = _pick_row_tile(B, tm)
    grid = (pl.cdiv(B, tm_eff),)

    x_bytes = jnp.dtype(x_in.dtype).itemsize
    out_bytes = jnp.dtype(out_dtype).itemsize
    w_bytes = (IN_DIM * H2p + H2p * H) * 2 + (H2p + H) * 4

    cost = pl.CostEstimate(
        flops=2 * B * (IN_DIM * H2p + H2p * H),
        transcendentals=0,
        bytes_accessed=B * IN_DIM * x_bytes + w_bytes + B * H * out_bytes,
    )

    # VMEM budget: double-buffered x / out tiles + resident weights + f32 h1.
    vmem_budget = (2 * tm_eff * IN_DIM * x_bytes
                   + 2 * tm_eff * H * out_bytes
                   + 2 * w_bytes
                   + 4 * tm_eff * H2p)
    try:
        vmem_cap = pltpu.get_tpu_info().vmem_capacity_bytes
    except Exception:
        vmem_cap = 64 * 1024 * 1024  # v7x per-core physical VMEM (worst case)
    vmem_limit = int(min(int(0.75 * vmem_cap),               # compiler headroom
                         max(4 * vmem_budget, 16 * 1024 * 1024)))

    out = pl.pallas_call(
        _encoder_kernel,
        out_shape=jax.ShapeDtypeStruct((B, H), out_dtype),
        grid_spec=pltpu.PrefetchScalarGridSpec(
            num_scalar_prefetch=0,
            grid=grid,
            in_specs=[
                pl.BlockSpec((tm_eff, IN_DIM), lambda i: (i, 0)),  # x rows (streamed)
                pl.BlockSpec((IN_DIM, H2p), lambda i: (0, 0)),     # W1 (VMEM-resident)
                pl.BlockSpec((1, H2p), lambda i: (0, 0)),          # b1
                pl.BlockSpec((H2p, H), lambda i: (0, 0)),          # W2 (VMEM-resident)
                pl.BlockSpec((1, H), lambda i: (0, 0)),            # b2
            ],
            out_specs=pl.BlockSpec((tm_eff, H), lambda i: (i, 0)),
        ),
        compiler_params=pltpu.CompilerParams(
            dimension_semantics=("parallel",),
            vmem_limit_bytes=vmem_limit,
        ),
        cost_estimate=cost,
    )(x_in, w1_p, b1_p, w2_p, b2_p)

    return out, frp_masks


def init_params(key, h):
    """Deterministic init matching nn.Linear shapes (uniform +/- 1/sqrt(fan_in))."""
    k1, k2, k3, k4 = jax.random.split(key, 4)
    lim1 = 1.0 / jnp.sqrt(jnp.float32(IN_DIM))
    lim2 = 1.0 / jnp.sqrt(jnp.float32(2 * h))
    w1 = jax.random.uniform(k1, (IN_DIM, 2 * h), jnp.float32, -lim1, lim1)
    b1 = jax.random.uniform(k2, (2 * h,), jnp.float32, -lim1, lim1)
    w2 = jax.random.uniform(k3, (2 * h, h), jnp.float32, -lim2, lim2)
    b2 = jax.random.uniform(k4, (h,), jnp.float32, -lim2, lim2)
    return w1, b1, w2, b2


if __name__ == "__main__":
    h = 32           # hidden size
    d = 0.1          # dropout rate (inference -> identity)

    key = jax.random.PRNGKey(0)
    kx1, kx2, km1, km2, kp = jax.random.split(key, 5)
    w1, b1, w2, b2 = init_params(kp, h)

    def reference(x_f32):
        # Pure-JAX reference with matching bf16-matmul / f32-accumulate numerics.
        xb = x_f32.astype(jnp.bfloat16)
        h1 = jnp.maximum(
            jnp.dot(xb, w1.astype(jnp.bfloat16),
                    preferred_element_type=jnp.float32) + b1, 0.0)
        return jnp.dot(h1.astype(jnp.bfloat16), w2.astype(jnp.bfloat16),
                       preferred_element_type=jnp.float32) + b2

    # --- Case 1: float32 fingerprints, small batch (single full-extent block).
    B1 = 16
    x1 = (jax.random.uniform(kx1, (B1, IN_DIM)) < 0.1).astype(jnp.float32)
    m1 = (jax.random.uniform(km1, (B1,)) > 0.5).astype(jnp.float32)
    out1, m1_out = fragment_ecfp_encoder(x1, m1, w1, b1, w2, b2)
    jax.block_until_ready(out1)
    jax.block_until_ready(m1_out)
    assert out1.shape == (B1, h)
    assert jnp.allclose(out1, reference(x1), atol=2e-2, rtol=2e-2)
    assert jnp.array_equal(m1_out, m1)

    # --- Case 2: int8 binary fingerprints, ragged batch (grid=2, partial last
    #     block) -> exercises the narrow-DMA path and the masked last writeback.
    B2 = 72
    x2 = (jax.random.uniform(kx2, (B2, IN_DIM)) < 0.1).astype(jnp.int8)
    m2 = (jax.random.uniform(km2, (B2,)) > 0.5).astype(jnp.float32)
    out2, m2_out = fragment_ecfp_encoder(x2, m2, w1, b1, w2, b2)
    jax.block_until_ready(out2)
    jax.block_until_ready(m2_out)
    assert out2.shape == (B2, h)
    assert out2.dtype == jnp.float32
    assert jnp.allclose(out2, reference(x2.astype(jnp.float32)), atol=2e-2, rtol=2e-2)
    assert jnp.array_equal(m2_out, m2)

    print("KERNEL_OK")
</pallas_src>

<mosaic_0001>
module attributes {stable_mosaic.version = 11 : i64} {
  func.func @_encoder_kernel(%arg0: i32, %arg1: memref<16x1024xbf16, #tpu.memory_space<vmem>>, %arg2: memref<1024x128xbf16, #tpu.memory_space<vmem>>, %arg3: memref<1x128xf32, #tpu.memory_space<vmem>>, %arg4: memref<128x32xbf16, #tpu.memory_space<vmem>>, %arg5: memref<1x32xf32, #tpu.memory_space<vmem>>, %arg6: memref<16x32xf32, #tpu.memory_space<vmem>>) attributes {dimension_semantics = [#tpu.dimension_semantics<parallel>], iteration_bounds = array<i64: 1>, scalar_prefetch = 0 : i64, scratch_operands = 0 : i64, tpu.core_type = #tpu.core_type<tc>, window_params = [{transform_indices = @transform_0, window_bounds = array<i64: 16, 1024>}, {pipeline_mode = #tpu.pipeline_mode<synchronous>, transform_indices = @transform_1, window_bounds = array<i64: 1024, 128>}, {pipeline_mode = #tpu.pipeline_mode<synchronous>, transform_indices = @transform_2, window_bounds = array<i64: 1, 128>}, {pipeline_mode = #tpu.pipeline_mode<synchronous>, transform_indices = @transform_3, window_bounds = array<i64: 128, 32>}, {pipeline_mode = #tpu.pipeline_mode<synchronous>, transform_indices = @transform_4, window_bounds = array<i64: 1, 32>}, {transform_indices = @transform_5, window_bounds = array<i64: 16, 32>}]} {
    %c0 = arith.constant 0 : index
    %c0_0 = arith.constant 0 : index
    %0 = vector.load %arg1[%c0, %c0_0] : memref<16x1024xbf16, #tpu.memory_space<vmem>>, vector<16x1024xbf16>
    %c0_1 = arith.constant 0 : index
    %c0_2 = arith.constant 0 : index
    %1 = vector.load %arg2[%c0_1, %c0_2] : memref<1024x128xbf16, #tpu.memory_space<vmem>>, vector<1024x128xbf16>
    %cst = arith.constant dense<0.000000e+00> : vector<16x128xf32>
    %2 = tpu.matmul %0, %1, %cst {dimension_numbers = #tpu.dot_dimension_numbers<[1], [0], [0], [1], [0, 0, 1, 1], [], []>} : vector<16x1024xbf16>, vector<1024x128xbf16>, vector<16x128xf32> -> vector<16x128xf32>
    %c0_3 = arith.constant 0 : index
    %c0_4 = arith.constant 0 : index
    %3 = vector.load %arg3[%c0_3, %c0_4] : memref<1x128xf32, #tpu.memory_space<vmem>>, vector<1x128xf32>
    %4 = vector.broadcast %3 : vector<1x128xf32> to vector<16x128xf32>
    %5 = arith.addf %2, %4 : vector<16x128xf32>
    %cst_5 = arith.constant 0.000000e+00 : f32
    %6 = vector.broadcast %cst_5 : f32 to vector<16x128xf32>
    %7 = arith.maximumf %5, %6 : vector<16x128xf32>
    %8 = arith.truncf %7 : vector<16x128xf32> to vector<16x128xbf16>
    %c0_6 = arith.constant 0 : index
    %c0_7 = arith.constant 0 : index
    %9 = vector.load %arg4[%c0_6, %c0_7] : memref<128x32xbf16, #tpu.memory_space<vmem>>, vector<128x32xbf16>
    %cst_8 = arith.constant dense<0.000000e+00> : vector<16x32xf32>
    %10 = tpu.matmul %8, %9, %cst_8 {dimension_numbers = #tpu.dot_dimension_numbers<[1], [0], [0], [1], [0, 0, 1, 1], [], []>} : vector<16x128xbf16>, vector<128x32xbf16>, vector<16x32xf32> -> vector<16x32xf32>
    %c0_9 = arith.constant 0 : index
    %c0_10 = arith.constant 0 : index
    %11 = vector.load %arg5[%c0_9, %c0_10] : memref<1x32xf32, #tpu.memory_space<vmem>>, vector<1x32xf32>
    %12 = vector.broadcast %11 : vector<1x32xf32> to vector<16x32xf32>
    %13 = arith.addf %10, %12 : vector<16x32xf32>
    %c0_11 = arith.constant 0 : index
    %c0_12 = arith.constant 0 : index
    %14 = vector.load %arg6[%c0_11, %c0_12] : memref<16x32xf32, #tpu.memory_space<vmem>>, vector<16x32xf32>
    tpu.vector_store %arg6[%c0_11, %c0_12], %13 {strides = array<i32>} : memref<16x32xf32, #tpu.memory_space<vmem>>, vector<16x32xf32>,
    return
  }
  func.func @transform_0(%arg0: i32) -> (i32, i32) {
    %c0_i32 = arith.constant 0 : i32
    %c0_i32_0 = arith.constant 0 : i32
    return %arg0, %c0_i32 : i32, i32
  }
  func.func @transform_1(%arg0: i32) -> (i32, i32) {
    %c0_i32 = arith.constant 0 : i32
    %c0_i32_0 = arith.constant 0 : i32
    %c0_i32_1 = arith.constant 0 : i32
    return %c0_i32, %c0_i32_0 : i32, i32
  }
  func.func @transform_2(%arg0: i32) -> (i32, i32) {
    %c0_i32 = arith.constant 0 : i32
    %c0_i32_0 = arith.constant 0 : i32
    %c0_i32_1 = arith.constant 0 : i32
    return %c0_i32, %c0_i32_0 : i32, i32
  }
  func.func @transform_3(%arg0: i32) -> (i32, i32) {
    %c0_i32 = arith.constant 0 : i32
    %c0_i32_0 = arith.constant 0 : i32
    %c0_i32_1 = arith.constant 0 : i32
    return %c0_i32, %c0_i32_0 : i32, i32
  }
  func.func @transform_4(%arg0: i32) -> (i32, i32) {
    %c0_i32 = arith.constant 0 : i32
    %c0_i32_0 = arith.constant 0 : i32
    %c0_i32_1 = arith.constant 0 : i32
    return %c0_i32, %c0_i32_0 : i32, i32
  }
  func.func @transform_5(%arg0: i32) -> (i32, i32) {
    %c0_i32 = arith.constant 0 : i32
    %c0_i32_0 = arith.constant 0 : i32
    return %arg0, %c0_i32 : i32, i32
  }
}

</mosaic_0001>

<llo_original>
// kernel: fragment_ecfp_encoder.1
$region0: #{fragment_ecfp_encoder.1}
  #allocation0 [shape = 'u32[]', space=smem, size = 0x4, offset = 0x4, fixed_abs, tag = 'smem constant byte address 0x4 - core index']
  #allocation1 [shape = 'u32[72,128]{1,0:T(1,128)}', space=vmem, size = 0x9000, scoped, tag = 'internal scratch']
  %s0 = inlined_call_operand.vmem [shape: bf16[16,1024], index: 0, kind: input, shape index: {}]
  %s1 = inlined_call_operand.vmem [shape: bf16[1024,128], index: 1, kind: input, shape index: {}]
  %s2 = inlined_call_operand.vmem [shape: f32[1,128], index: 2, kind: input, shape index: {}]
  %s3 = inlined_call_operand.vmem [shape: bf16[128,32], index: 3, kind: input, shape index: {}]
  %s4 = inlined_call_operand.vmem [shape: f32[1,32], index: 4, kind: input, shape index: {}]
  %s5 = inlined_call_operand.hbm [shape: f32[16,32], index: 5, kind: output, shape index: {}]
  %s6 = sld [smem:[#allocation0]]
  $region30: #{fragment_ecfp_encoder.1} parent=0
    _
  %s8 = ssub.s32 1, %s6
  %s9 = scalar_select 0, %s8, %s6
  $region1: #{fragment_ecfp_encoder.1} parent=0
    #allocation2 [shape = 'u8[8192]{0}', space=vmem, size = 0x2000, scoped, tag = 'output window, operand 0, single buffered']
    #allocation3 [shape = 's32[1]{0}', space=sflag, size = 0x4, scoped, tag = 'scoped memory for fragment_ecfp_encoder.1']
    %10 = vsyncpa [#allocation3], 0
    // Predicated region
    $region2: #{fragment_ecfp_encoder.1} parent=1 // pred_check
      _
    $region3: #{fragment_ecfp_encoder.1} parent=1 // pred_check_branch
      %12 = sbr.rel (0) target = $region5
    $region4: #{fragment_ecfp_encoder.1} parent=1 // pred_region
      _
    $region5: #{fragment_ecfp_encoder.1} parent=1 // pred_fallthru
      _
    // Predicated region
    $region6: #{fragment_ecfp_encoder.1} parent=1 // pred_check
      _
    $region7: #{fragment_ecfp_encoder.1} parent=1 // pred_check_branch
      %14 = sbr.rel (0) target = $region9
    $region8: #{fragment_ecfp_encoder.1} parent=1 // pred_region
      _
    $region9: #{fragment_ecfp_encoder.1} parent=1 // pred_fallthru
      _
    // Predicated region
    $region10: #{fragment_ecfp_encoder.1} parent=1 // pred_check
      _
    $region11: #{fragment_ecfp_encoder.1} parent=1 // pred_check_branch
      %16 = sbr.rel (0) target = $region13
    $region12: #{fragment_ecfp_encoder.1} parent=1 // pred_region
      _
    $region13: #{fragment_ecfp_encoder.1} parent=1 // pred_fallthru
      _
    // Predicated region
    $region14: #{fragment_ecfp_encoder.1} parent=1 // pred_check
      _
    $region15: #{fragment_ecfp_encoder.1} parent=1 // pred_check_branch
      %18 = sbr.rel (0) target = $region17
    $region16: #{fragment_ecfp_encoder.1} parent=1 // pred_region
      _
    $region17: #{fragment_ecfp_encoder.1} parent=1 // pred_fallthru
      _
    // Predicated region
    $region18: #{fragment_ecfp_encoder.1} parent=1 // pred_check
      _
    $region19: #{fragment_ecfp_encoder.1} parent=1 // pred_check_branch
      %20 = sbr.rel (0) target = $region21
    $region20: #{fragment_ecfp_encoder.1} parent=1 // pred_region
      _
    $region21: #{fragment_ecfp_encoder.1} parent=1 // pred_fallthru
      _
    %v21 = vld [vmem:[%s0] sm:$0xff]
    %v22 = vld [vmem:[%s0 + $0x8] sm:$0xff]
    %v23 = vld [vmem:[%s0 + $0x10] sm:$0xff]
    %v24 = vld [vmem:[%s0 + $0x18] sm:$0xff]
    %v25 = vld [vmem:[%s0 + $0x20] sm:$0xff]
    %v26 = vld [vmem:[%s0 + $0x28] sm:$0xff]
    %v27 = vld [vmem:[%s0 + $0x30] sm:$0xff]
    %v28 = vld [vmem:[%s0 + $0x38] sm:$0xff]
    %v29 = vld [vmem:[%s1] sm:$0xf]
    %v30 = vld [vmem:[%s1 + $0x4] sm:$0xf]
    %v31 = vld [vmem:[%s1 + $0x8] sm:$0xf]
    %v32 = vld [vmem:[%s1 + $0xc] sm:$0xf]
    %v33 = vld [vmem:[%s1 + $0x10] sm:$0xf]
    %v34 = vld [vmem:[%s1 + $0x14] sm:$0xf]
    %v35 = vld [vmem:[%s1 + $0x18] sm:$0xf]
    %v36 = vld [vmem:[%s1 + $0x1c] sm:$0xf]
    %v37 = vld [vmem:[%s1 + $0x20] sm:$0xf]
    %v38 = vld [vmem:[%s1 + $0x24] sm:$0xf]
    %v39 = vld [vmem:[%s1 + $0x28] sm:$0xf]
    %v40 = vld [vmem:[%s1 + $0x2c] sm:$0xf]
    %v41 = vld [vmem:[%s1 + $0x30] sm:$0xf]
    %v42 = vld [vmem:[%s1 + $0x34] sm:$0xf]
    %v43 = vld [vmem:[%s1 + $0x38] sm:$0xf]
    %v44 = vld [vmem:[%s1 + $0x3c] sm:$0xf]
    %v45 = vld [vmem:[%s1 + $0x40] sm:$0xf]
    %v46 = vld [vmem:[%s1 + $0x44] sm:$0xf]
    %v47 = vld [vmem:[%s1 + $0x48] sm:$0xf]
    %v48 = vld [vmem:[%s1 + $0x4c] sm:$0xf]
    %v49 = vld [vmem:[%s1 + $0x50] sm:$0xf]
    %v50 = vld [vmem:[%s1 + $0x54] sm:$0xf]
    %v51 = vld [vmem:[%s1 + $0x58] sm:$0xf]
    %v52 = vld [vmem:[%s1 + $0x5c] sm:$0xf]
    %v53 = vld [vmem:[%s1 + $0x60] sm:$0xf]
    %v54 = vld [vmem:[%s1 + $0x64] sm:$0xf]
    %v55 = vld [vmem:[%s1 + $0x68] sm:$0xf]
    %v56 = vld [vmem:[%s1 + $0x6c] sm:$0xf]
    %v57 = vld [vmem:[%s1 + $0x70] sm:$0xf]
    %v58 = vld [vmem:[%s1 + $0x74] sm:$0xf]
    %v59 = vld [vmem:[%s1 + $0x78] sm:$0xf]
    %v60 = vld [vmem:[%s1 + $0x7c] sm:$0xf]
    %v61 = vld [vmem:[%s1 + $0x80] sm:$0xf]
    %v62 = vld [vmem:[%s1 + $0x84] sm:$0xf]
    %v63 = vld [vmem:[%s1 + $0x88] sm:$0xf]
    %v64 = vld [vmem:[%s1 + $0x8c] sm:$0xf]
    %v65 = vld [vmem:[%s1 + $0x90] sm:$0xf]
    %v66 = vld [vmem:[%s1 + $0x94] sm:$0xf]
    %v67 = vld [vmem:[%s1 + $0x98] sm:$0xf]
    %v68 = vld [vmem:[%s1 + $0x9c] sm:$0xf]
    %v69 = vld [vmem:[%s1 + $0xa0] sm:$0xf]
    %v70 = vld [vmem:[%s1 + $0xa4] sm:$0xf]
    %v71 = vld [vmem:[%s1 + $0xa8] sm:$0xf]
    %v72 = vld [vmem:[%s1 + $0xac] sm:$0xf]
    %v73 = vld [vmem:[%s1 + $0xb0] sm:$0xf]
    %v74 = vld [vmem:[%s1 + $0xb4] sm:$0xf]
    %v75 = vld [vmem:[%s1 + $0xb8] sm:$0xf]
    %v76 = vld [vmem:[%s1 + $0xbc] sm:$0xf]
    %v77 = vld [vmem:[%s1 + $0xc0] sm:$0xf]
    %v78 = vld [vmem:[%s1 + $0xc4] sm:$0xf]
    %v79 = vld [vmem:[%s1 + $0xc8] sm:$0xf]
    %v80 = vld [vmem:[%s1 + $0xcc] sm:$0xf]
    %v81 = vld [vmem:[%s1 + $0xd0] sm:$0xf]
    %v82 = vld [vmem:[%s1 + $0xd4] sm:$0xf]
    %v83 = vld [vmem:[%s1 + $0xd8] sm:$0xf]
    %v84 = vld [vmem:[%s1 + $0xdc] sm:$0xf]
    %v85 = vld [vmem:[%s1 + $0xe0] sm:$0xf]
    %v86 = vld [vmem:[%s1 + $0xe4] sm:$0xf]
    %v87 = vld [vmem:[%s1 + $0xe8] sm:$0xf]
    %v88 = vld [vmem:[%s1 + $0xec] sm:$0xf]
    %v89 = vld [vmem:[%s1 + $0xf0] sm:$0xf]
    %v90 = vld [vmem:[%s1 + $0xf4] sm:$0xf]
    %v91 = vld [vmem:[%s1 + $0xf8] sm:$0xf]
    %v92 = vld [vmem:[%s1 + $0xfc] sm:$0xf]
    %v93 = vld [vmem:[%s1 + $0x100] sm:$0xf]
    %v94 = vld [vmem:[%s1 + $0x104] sm:$0xf]
    %v95 = vld [vmem:[%s1 + $0x108] sm:$0xf]
    %v96 = vld [vmem:[%s1 + $0x10c] sm:$0xf]
    %v97 = vld [vmem:[%s1 + $0x110] sm:$0xf]
    %v98 = vld [vmem:[%s1 + $0x114] sm:$0xf]
    %v99 = vld [vmem:[%s1 + $0x118] sm:$0xf]
    %v100 = vld [vmem:[%s1 + $0x11c] sm:$0xf]
    %v101 = vld [vmem:[%s1 + $0x120] sm:$0xf]
    %v102 = vld [vmem:[%s1 + $0x124] sm:$0xf]
    %v103 = vld [vmem:[%s1 + $0x128] sm:$0xf]
    %v104 = vld [vmem:[%s1 + $0x12c] sm:$0xf]
    %v105 = vld [vmem:[%s1 + $0x130] sm:$0xf]
    %v106 = vld [vmem:[%s1 + $0x134] sm:$0xf]
    %v107 = vld [vmem:[%s1 + $0x138] sm:$0xf]
    %v108 = vld [vmem:[%s1 + $0x13c] sm:$0xf]
    %v109 = vld [vmem:[%s1 + $0x140] sm:$0xf]
    %v110 = vld [vmem:[%s1 + $0x144] sm:$0xf]
    %v111 = vld [vmem:[%s1 + $0x148] sm:$0xf]
    %v112 = vld [vmem:[%s1 + $0x14c] sm:$0xf]
    %v113 = vld [vmem:[%s1 + $0x150] sm:$0xf]
    %v114 = vld [vmem:[%s1 + $0x154] sm:$0xf]
    %v115 = vld [vmem:[%s1 + $0x158] sm:$0xf]
    %v116 = vld [vmem:[%s1 + $0x15c] sm:$0xf]
    %v117 = vld [vmem:[%s1 + $0x160] sm:$0xf]
    %v118 = vld [vmem:[%s1 + $0x164] sm:$0xf]
    %v119 = vld [vmem:[%s1 + $0x168] sm:$0xf]
    %v120 = vld [vmem:[%s1 + $0x16c] sm:$0xf]
    %v121 = vld [vmem:[%s1 + $0x170] sm:$0xf]
    %v122 = vld [vmem:[%s1 + $0x174] sm:$0xf]
    %v123 = vld [vmem:[%s1 + $0x178] sm:$0xf]
    %v124 = vld [vmem:[%s1 + $0x17c] sm:$0xf]
    %v125 = vld [vmem:[%s1 + $0x180] sm:$0xf]
    %v126 = vld [vmem:[%s1 + $0x184] sm:$0xf]
    %v127 = vld [vmem:[%s1 + $0x188] sm:$0xf]
    %v128 = vld [vmem:[%s1 + $0x18c] sm:$0xf]
    %v129 = vld [vmem:[%s1 + $0x190] sm:$0xf]
    %v130 = vld [vmem:[%s1 + $0x194] sm:$0xf]
    %v131 = vld [vmem:[%s1 + $0x198] sm:$0xf]
    %v132 = vld [vmem:[%s1 + $0x19c] sm:$0xf]
    %v133 = vld [vmem:[%s1 + $0x1a0] sm:$0xf]
    %v134 = vld [vmem:[%s1 + $0x1a4] sm:$0xf]
    %v135 = vld [vmem:[%s1 + $0x1a8] sm:$0xf]
    %v136 = vld [vmem:[%s1 + $0x1ac] sm:$0xf]
    %v137 = vld [vmem:[%s1 + $0x1b0] sm:$0xf]
    %v138 = vld [vmem:[%s1 + $0x1b4] sm:$0xf]
    %v139 = vld [vmem:[%s1 + $0x1b8] sm:$0xf]
    %v140 = vld [vmem:[%s1 + $0x1bc] sm:$0xf]
    %v141 = vld [vmem:[%s1 + $0x1c0] sm:$0xf]
    %v142 = vld [vmem:[%s1 + $0x1c4] sm:$0xf]
    %v143 = vld [vmem:[%s1 + $0x1c8] sm:$0xf]
    %v144 = vld [vmem:[%s1 + $0x1cc] sm:$0xf]
    %v145 = vld [vmem:[%s1 + $0x1d0] sm:$0xf]
    %v146 = vld [vmem:[%s1 + $0x1d4] sm:$0xf]
    %v147 = vld [vmem:[%s1 + $0x1d8] sm:$0xf]
    %v148 = vld [vmem:[%s1 + $0x1dc] sm:$0xf]
    %v149 = vld [vmem:[%s1 + $0x1e0] sm:$0xf]
    %v150 = vld [vmem:[%s1 + $0x1e4] sm:$0xf]
    %v151 = vld [vmem:[%s1 + $0x1e8] sm:$0xf]
    %v152 = vld [vmem:[%s1 + $0x1ec] sm:$0xf]
    %v153 = vld [vmem:[%s1 + $0x1f0] sm:$0xf]
    %v154 = vld [vmem:[%s1 + $0x1f4] sm:$0xf]
    %v155 = vld [vmem:[%s1 + $0x1f8] sm:$0xf]
    %v156 = vld [vmem:[%s1 + $0x1fc] sm:$0xf]
    %v157 = vld [vmem:[%s2] sm:$0x1]
    %v159 = vperm.slane %v157, 0
    %v169 = vunpack.c.l.b16 %v21
    %v170 = vunpack.c.h.b16 %v21
    %v171 = vunpack.c.l.b16 %v22
    %v172 = vunpack.c.h.b16 %v22
    %v173 = vunpack.c.l.b16 %v23
    %v174 = vunpack.c.h.b16 %v23
    %v175 = vunpack.c.l.b16 %v24
    %v176 = vunpack.c.h.b16 %v24
    %v177 = vunpack.c.l.b16 %v25
    %v178 = vunpack.c.h.b16 %v25
    %v179 = vunpack.c.l.b16 %v26
    %v180 = vunpack.c.h.b16 %v26
    %v181 = vunpack.c.l.b16 %v27
    %v182 = vunpack.c.h.b16 %v27
    %v183 = vunpack.c.l.b16 %v28
    %v184 = vunpack.c.h.b16 %v28
    %v185 = vpack.c.b16 %v177, %v169
    %v186 = vpack.c.b16 %v178, %v170
    %v187 = vpack.c.b16 %v179, %v171
    %v188 = vpack.c.b16 %v180, %v172
    %v189 = vpack.c.b16 %v181, %v173
    %v190 = vpack.c.b16 %v182, %v174
    %v191 = vpack.c.b16 %v183, %v175
    %v192 = vpack.c.b16 %v184, %v176
    %v329 = vunpack.c.l.b16 %v29
    %v330 = vunpack.c.l.b16 %v30
    %v331 = vunpack.c.l.b16 %v31
    %v332 = vunpack.c.l.b16 %v32
    %v333 = vunpack.c.l.b16 %v33
    %v334 = vunpack.c.l.b16 %v34
    %v335 = vunpack.c.l.b16 %v35
    %v336 = vunpack.c.l.b16 %v36
    %v337 = vunpack.c.l.b16 %v37
    %v338 = vunpack.c.l.b16 %v38
    %v339 = vunpack.c.l.b16 %v39
    %v340 = vunpack.c.l.b16 %v40
    %v341 = vunpack.c.l.b16 %v41
    %v342 = vunpack.c.l.b16 %v42
    %v343 = vunpack.c.l.b16 %v43
    %v344 = vunpack.c.l.b16 %v44
    %v345 = vunpack.c.l.b16 %v45
    %v346 = vunpack.c.l.b16 %v46
    %v347 = vunpack.c.l.b16 %v47
    %v348 = vunpack.c.l.b16 %v48
    %v349 = vunpack.c.l.b16 %v49
    %v350 = vunpack.c.l.b16 %v50
    %v351 = vunpack.c.l.b16 %v51
    %v352 = vunpack.c.l.b16 %v52
    %v353 = vunpack.c.l.b16 %v53
    %v354 = vunpack.c.l.b16 %v54
    %v355 = vunpack.c.l.b16 %v55
    %v356 = vunpack.c.l.b16 %v56
    %v357 = vunpack.c.l.b16 %v57
    %v358 = vunpack.c.l.b16 %v58
    %v359 = vunpack.c.l.b16 %v59
    %v360 = vunpack.c.l.b16 %v60
    %v361 = vunpack.c.l.b16 %v61
    %v362 = vunpack.c.l.b16 %v62
    %v363 = vunpack.c.l.b16 %v63
    %v364 = vunpack.c.l.b16 %v64
    %v365 = vunpack.c.l.b16 %v65
    %v366 = vunpack.c.l.b16 %v66
    %v367 = vunpack.c.l.b16 %v67
    %v368 = vunpack.c.l.b16 %v68
    %v369 = vunpack.c.l.b16 %v69
    %v370 = vunpack.c.l.b16 %v70
    %v371 = vunpack.c.l.b16 %v71
    %v372 = vunpack.c.l.b16 %v72
    %v373 = vunpack.c.l.b16 %v73
    %v374 = vunpack.c.l.b16 %v74
    %v375 = vunpack.c.l.b16 %v75
    %v376 = vunpack.c.l.b16 %v76
    %v377 = vunpack.c.l.b16 %v77
    %v378 = vunpack.c.l.b16 %v78
    %v379 = vunpack.c.l.b16 %v79
    %v380 = vunpack.c.l.b16 %v80
    %v381 = vunpack.c.l.b16 %v81
    %v382 = vunpack.c.l.b16 %v82
    %v383 = vunpack.c.l.b16 %v83
    %v384 = vunpack.c.l.b16 %v84
    %v385 = vunpack.c.l.b16 %v85
    %v386 = vunpack.c.l.b16 %v86
    %v387 = vunpack.c.l.b16 %v87
    %v388 = vunpack.c.l.b16 %v88
    %v389 = vunpack.c.l.b16 %v89
    %v390 = vunpack.c.l.b16 %v90
    %v391 = vunpack.c.l.b16 %v91
    %v392 = vunpack.c.l.b16 %v92
    %v393 = vunpack.c.l.b16 %v93
    %v394 = vunpack.c.l.b16 %v94
    %v395 = vunpack.c.l.b16 %v95
    %v396 = vunpack.c.l.b16 %v96
    %v397 = vunpack.c.l.b16 %v97
    %v398 = vunpack.c.l.b16 %v98
    %v399 = vunpack.c.l.b16 %v99
    %v400 = vunpack.c.l.b16 %v100
    %v401 = vunpack.c.l.b16 %v101
    %v402 = vunpack.c.l.b16 %v102
    %v403 = vunpack.c.l.b16 %v103
    %v404 = vunpack.c.l.b16 %v104
    %v405 = vunpack.c.l.b16 %v105
    %v406 = vunpack.c.l.b16 %v106
    %v407 = vunpack.c.l.b16 %v107
    %v408 = vunpack.c.l.b16 %v108
    %v409 = vunpack.c.l.b16 %v109
    %v410 = vunpack.c.l.b16 %v110
    %v411 = vunpack.c.l.b16 %v111
    %v412 = vunpack.c.l.b16 %v112
    %v413 = vunpack.c.l.b16 %v113
    %v414 = vunpack.c.l.b16 %v114
    %v415 = vunpack.c.l.b16 %v115
    %v416 = vunpack.c.l.b16 %v116
    %v417 = vunpack.c.l.b16 %v117
    %v418 = vunpack.c.l.b16 %v118
    %v419 = vunpack.c.l.b16 %v119
    %v420 = vunpack.c.l.b16 %v120
    %v421 = vunpack.c.l.b16 %v121
    %v422 = vunpack.c.l.b16 %v122
    %v423 = vunpack.c.l.b16 %v123
    %v424 = vunpack.c.l.b16 %v124
    %v425 = vunpack.c.l.b16 %v125
    %v426 = vunpack.c.l.b16 %v126
    %v427 = vunpack.c.l.b16 %v127
    %v428 = vunpack.c.l.b16 %v128
    %v429 = vunpack.c.l.b16 %v129
    %v430 = vunpack.c.l.b16 %v130
    %v431 = vunpack.c.l.b16 %v131
    %v432 = vunpack.c.l.b16 %v132
    %v433 = vunpack.c.l.b16 %v133
    %v434 = vunpack.c.l.b16 %v134
    %v435 = vunpack.c.l.b16 %v135
    %v436 = vunpack.c.l.b16 %v136
    %v437 = vunpack.c.l.b16 %v137
    %v438 = vunpack.c.l.b16 %v138
    %v439 = vunpack.c.l.b16 %v139
    %v440 = vunpack.c.l.b16 %v140
    %v441 = vunpack.c.l.b16 %v141
    %v442 = vunpack.c.l.b16 %v142
    %v443 = vunpack.c.l.b16 %v143
    %v444 = vunpack.c.l.b16 %v144
    %v445 = vunpack.c.l.b16 %v145
    %v446 = vunpack.c.l.b16 %v146
    %v447 = vunpack.c.l.b16 %v147
    %v448 = vunpack.c.l.b16 %v148
    %v449 = vunpack.c.l.b16 %v149
    %v450 = vunpack.c.l.b16 %v150
    %v451 = vunpack.c.l.b16 %v151
    %v452 = vunpack.c.l.b16 %v152
    %v453 = vunpack.c.l.b16 %v153
    %v454 = vunpack.c.l.b16 %v154
    %v455 = vunpack.c.l.b16 %v155
    %v456 = vunpack.c.l.b16 %v156
    %v457 = vpack.c.b16 %v330, %v329
    %v458 = vpack.c.b16 %v332, %v331
    %v459 = vpack.c.b16 %v334, %v333
    %v460 = vpack.c.b16 %v336, %v335
    %v461 = vpack.c.b16 %v338, %v337
    %v462 = vpack.c.b16 %v340, %v339
    %v463 = vpack.c.b16 %v342, %v341
    %v464 = vpack.c.b16 %v344, %v343
    %v465 = vpack.c.b16 %v346, %v345
    %v466 = vpack.c.b16 %v348, %v347
    %v467 = vpack.c.b16 %v350, %v349
    %v468 = vpack.c.b16 %v352, %v351
    %v469 = vpack.c.b16 %v354, %v353
    %v470 = vpack.c.b16 %v356, %v355
    %v471 = vpack.c.b16 %v358, %v357
    %v472 = vpack.c.b16 %v360, %v359
    %v473 = vpack.c.b16 %v362, %v361
    %v474 = vpack.c.b16 %v364, %v363
    %v475 = vpack.c.b16 %v366, %v365
    %v476 = vpack.c.b16 %v368, %v367
    %v477 = vpack.c.b16 %v370, %v369
    %v478 = vpack.c.b16 %v372, %v371
    %v479 = vpack.c.b16 %v374, %v373
    %v480 = vpack.c.b16 %v376, %v375
    %v481 = vpack.c.b16 %v378, %v377
    %v482 = vpack.c.b16 %v380, %v379
    %v483 = vpack.c.b16 %v382, %v381
    %v484 = vpack.c.b16 %v384, %v383
    %v485 = vpack.c.b16 %v386, %v385
    %v486 = vpack.c.b16 %v388, %v387
    %v487 = vpack.c.b16 %v390, %v389
    %v488 = vpack.c.b16 %v392, %v391
    %v489 = vpack.c.b16 %v394, %v393
    %v490 = vpack.c.b16 %v396, %v395
    %v491 = vpack.c.b16 %v398, %v397
    %v492 = vpack.c.b16 %v400, %v399
    %v493 = vpack.c.b16 %v402, %v401
    %v494 = vpack.c.b16 %v404, %v403
    %v495 = vpack.c.b16 %v406, %v405
    %v496 = vpack.c.b16 %v408, %v407
    %v497 = vpack.c.b16 %v410, %v409
    %v498 = vpack.c.b16 %v412, %v411
    %v499 = vpack.c.b16 %v414, %v413
    %v500 = vpack.c.b16 %v416, %v415
    %v501 = vpack.c.b16 %v418, %v417
    %v502 = vpack.c.b16 %v420, %v419
    %v503 = vpack.c.b16 %v422, %v421
    %v504 = vpack.c.b16 %v424, %v423
    %v505 = vpack.c.b16 %v426, %v425
    %v506 = vpack.c.b16 %v428, %v427
    %v507 = vpack.c.b16 %v430, %v429
    %v508 = vpack.c.b16 %v432, %v431
    %v509 = vpack.c.b16 %v434, %v433
    %v510 = vpack.c.b16 %v436, %v435
    %v511 = vpack.c.b16 %v438, %v437
    %v512 = vpack.c.b16 %v440, %v439
    %v513 = vpack.c.b16 %v442, %v441
    %v514 = vpack.c.b16 %v444, %v443
    %v515 = vpack.c.b16 %v446, %v445
    %v516 = vpack.c.b16 %v448, %v447
    %v517 = vpack.c.b16 %v450, %v449
    %v518 = vpack.c.b16 %v452, %v451
    %v519 = vpack.c.b16 %v454, %v453
    %v520 = vpack.c.b16 %v456, %v455
    %585 = vmatpush.bf16.msra.mxu0 %v464
    %586 = vmatpush.bf16.msra.mxu0 %v463
    %587 = vmatpush.bf16.msra.mxu0 %v462
    %588 = vmatpush.bf16.msra.mxu0 %v461
    %589 = vmatpush.bf16.msra.mxu0 %v460
    %590 = vmatpush.bf16.msra.mxu0 %v459
    %591 = vmatpush.bf16.msra.mxu0 %v458
    %592 = vmatpush.bf16.msra.mxu0 %v457
    %593 = vmatmul.bf16.gmra.mxu0 %v185
    %v594 = vpop.f32.mrf.mxu0
    %v595 = vadd.f32 %v159, %v594
    %v596 = vpop.f32.mrf.mxu0
    %v597 = vadd.f32 %v159, %v596
    %598 = vdwg.mxu0
    %599 = vmatpush.bf16.msra.mxu0 %v472
    %600 = vmatpush.bf16.msra.mxu0 %v471
    %601 = vmatpush.bf16.msra.mxu0 %v470
    %602 = vmatpush.bf16.msra.mxu0 %v469
    %603 = vmatpush.bf16.msra.mxu0 %v468
    %604 = vmatpush.bf16.msra.mxu0 %v467
    %605 = vmatpush.bf16.msra.mxu0 %v466
    %606 = vmatpush.bf16.msra.mxu0 %v465
    %607 = vmatmul.bf16.gmra.mxu0 %v186
    %v608 = vpop.f32.mrf.mxu0
    %v609 = vadd.f32 %v595, %v608
    %v610 = vpop.f32.mrf.mxu0
    %v611 = vadd.f32 %v597, %v610
    %612 = vdwg.mxu0
    %613 = vmatpush.bf16.msra.mxu0 %v480
    %614 = vmatpush.bf16.msra.mxu0 %v479
    %615 = vmatpush.bf16.msra.mxu0 %v478
    %616 = vmatpush.bf16.msra.mxu0 %v477
    %617 = vmatpush.bf16.msra.mxu0 %v476
    %618 = vmatpush.bf16.msra.mxu0 %v475
    %619 = vmatpush.bf16.msra.mxu0 %v474
    %620 = vmatpush.bf16.msra.mxu0 %v473
    %621 = vmatmul.bf16.gmra.mxu0 %v187
    %v622 = vpop.f32.mrf.mxu0
    %v623 = vadd.f32 %v609, %v622
    %v624 = vpop.f32.mrf.mxu0
    %v625 = vadd.f32 %v611, %v624
    %626 = vdwg.mxu0
    %627 = vmatpush.bf16.msra.mxu0 %v488
    %628 = vmatpush.bf16.msra.mxu0 %v487
    %629 = vmatpush.bf16.msra.mxu0 %v486
    %630 = vmatpush.bf16.msra.mxu0 %v485
    %631 = vmatpush.bf16.msra.mxu0 %v484
    %632 = vmatpush.bf16.msra.mxu0 %v483
    %633 = vmatpush.bf16.msra.mxu0 %v482
    %634 = vmatpush.bf16.msra.mxu0 %v481
    %635 = vmatmul.bf16.gmra.mxu0 %v188
    %v636 = vpop.f32.mrf.mxu0
    %v637 = vadd.f32 %v623, %v636
    %v638 = vpop.f32.mrf.mxu0
    %v639 = vadd.f32 %v625, %v638
    %640 = vdwg.mxu0
    %641 = vmatpush.bf16.msra.mxu0 %v496
    %642 = vmatpush.bf16.msra.mxu0 %v495
    %643 = vmatpush.bf16.msra.mxu0 %v494
    %644 = vmatpush.bf16.msra.mxu0 %v493
    %645 = vmatpush.bf16.msra.mxu0 %v492
    %646 = vmatpush.bf16.msra.mxu0 %v491
    %647 = vmatpush.bf16.msra.mxu0 %v490
    %648 = vmatpush.bf16.msra.mxu0 %v489
    %649 = vmatmul.bf16.gmra.mxu0 %v189
    %v650 = vpop.f32.mrf.mxu0
    %v651 = vadd.f32 %v637, %v650
    %v652 = vpop.f32.mrf.mxu0
    %v653 = vadd.f32 %v639, %v652
    %654 = vdwg.mxu0
    %655 = vmatpush.bf16.msra.mxu0 %v504
    %656 = vmatpush.bf16.msra.mxu0 %v503
    %657 = vmatpush.bf16.msra.mxu0 %v502
    %658 = vmatpush.bf16.msra.mxu0 %v501
    %659 = vmatpush.bf16.msra.mxu0 %v500
    %660 = vmatpush.bf16.msra.mxu0 %v499
    %661 = vmatpush.bf16.msra.mxu0 %v498
    %662 = vmatpush.bf16.msra.mxu0 %v497
    %663 = vmatmul.bf16.gmra.mxu0 %v190
    %v664 = vpop.f32.mrf.mxu0
    %v665 = vadd.f32 %v651, %v664
    %v666 = vpop.f32.mrf.mxu0
    %v667 = vadd.f32 %v653, %v666
    %668 = vdwg.mxu0
    %669 = vmatpush.bf16.msra.mxu0 %v512
    %670 = vmatpush.bf16.msra.mxu0 %v511
    %671 = vmatpush.bf16.msra.mxu0 %v510
    %672 = vmatpush.bf16.msra.mxu0 %v509
    %673 = vmatpush.bf16.msra.mxu0 %v508
    %674 = vmatpush.bf16.msra.mxu0 %v507
    %675 = vmatpush.bf16.msra.mxu0 %v506
    %676 = vmatpush.bf16.msra.mxu0 %v505
    %677 = vmatmul.bf16.gmra.mxu0 %v191
    %v678 = vpop.f32.mrf.mxu0
    %v679 = vadd.f32 %v665, %v678
    %v680 = vpop.f32.mrf.mxu0
    %v681 = vadd.f32 %v667, %v680
    %682 = vdwg.mxu0
    %683 = vmatpush.bf16.msra.mxu0 %v520
    %684 = vmatpush.bf16.msra.mxu0 %v519
    %685 = vmatpush.bf16.msra.mxu0 %v518
    %686 = vmatpush.bf16.msra.mxu0 %v517
    %687 = vmatpush.bf16.msra.mxu0 %v516
    %688 = vmatpush.bf16.msra.mxu0 %v515
    %689 = vmatpush.bf16.msra.mxu0 %v514
    %690 = vmatpush.bf16.msra.mxu0 %v513
    %691 = vmatmul.bf16.gmra.mxu0 %v192
    %v692 = vpop.f32.mrf.mxu0
    %v693 = vadd.f32 %v679, %v692
    %v694 = vpop.f32.mrf.mxu0
    %v695 = vadd.f32 %v681, %v694
    %696 = vdwg.mxu0
    %v697 = vmax.f32 %v693, 0.0
    %v698 = vmax.f32 %v695, 0.0
    %v699 = vpack.c.bf16 %v698, %v697
    %v700 = vld [vmem:[%s3] sm:$0xf]
    %v701 = vld [vmem:[%s3 + $0x4] sm:$0xf]
    %v702 = vld [vmem:[%s3 + $0x8] sm:$0xf]
    %v703 = vld [vmem:[%s3 + $0xc] sm:$0xf]
    %v704 = vld [vmem:[%s3 + $0x10] sm:$0xf]
    %v705 = vld [vmem:[%s3 + $0x14] sm:$0xf]
    %v706 = vld [vmem:[%s3 + $0x18] sm:$0xf]
    %v707 = vld [vmem:[%s3 + $0x1c] sm:$0xf]
    %v708 = vld [vmem:[%s3 + $0x20] sm:$0xf]
    %v709 = vld [vmem:[%s3 + $0x24] sm:$0xf]
    %v710 = vld [vmem:[%s3 + $0x28] sm:$0xf]
    %v711 = vld [vmem:[%s3 + $0x2c] sm:$0xf]
    %v712 = vld [vmem:[%s3 + $0x30] sm:$0xf]
    %v713 = vld [vmem:[%s3 + $0x34] sm:$0xf]
    %v714 = vld [vmem:[%s3 + $0x38] sm:$0xf]
    %v715 = vld [vmem:[%s3 + $0x3c] sm:$0xf]
    %v716 = vld [vmem:[%s4] sm:$0x1]
    %v718 = vperm.slane %v716, 0
    %v736 = vunpack.c.l.b16 %v700
    %v737 = vunpack.c.l.b16 %v701
    %v738 = vunpack.c.l.b16 %v702
    %v739 = vunpack.c.l.b16 %v703
    %v740 = vunpack.c.l.b16 %v704
    %v741 = vunpack.c.l.b16 %v705
    %v742 = vunpack.c.l.b16 %v706
    %v743 = vunpack.c.l.b16 %v707
    %v744 = vunpack.c.l.b16 %v708
    %v745 = vunpack.c.l.b16 %v709
    %v746 = vunpack.c.l.b16 %v710
    %v747 = vunpack.c.l.b16 %v711
    %v748 = vunpack.c.l.b16 %v712
    %v749 = vunpack.c.l.b16 %v713
    %v750 = vunpack.c.l.b16 %v714
    %v751 = vunpack.c.l.b16 %v715
    %v752 = vpack.c.b16 %v737, %v736
    %v753 = vpack.c.b16 %v739, %v738
    %v754 = vpack.c.b16 %v741, %v740
    %v755 = vpack.c.b16 %v743, %v742
    %v756 = vpack.c.b16 %v745, %v744
    %v757 = vpack.c.b16 %v747, %v746
    %v758 = vpack.c.b16 %v749, %v748
    %v759 = vpack.c.b16 %v751, %v750
    %768 = vmatpush.bf16.msra.mxu0 %v759
    %769 = vmatpush.bf16.msra.mxu0 %v758
    %770 = vmatpush.bf16.msra.mxu0 %v757
    %771 = vmatpush.bf16.msra.mxu0 %v756
    %772 = vmatpush.bf16.msra.mxu0 %v755
    %773 = vmatpush.bf16.msra.mxu0 %v754
    %774 = vmatpush.bf16.msra.mxu0 %v753
    %775 = vmatpush.bf16.msra.mxu0 %v752
    %776 = vmatmul.bf16.gmra.mxu0 %v699
    %v777 = vpop.f32.mrf.mxu0
    %v778 = vadd.f32 %v718, %v777
    %v779 = vpop.f32.mrf.mxu0
    %v780 = vadd.f32 %v718, %v779
    %781 = vdwg.mxu0
    %vm782 = vcmask 261120
    %783 = vst.msk [vmem:[#allocation2] sm:$0xff] %vm782, %v778
    %784 = vst.msk [vmem:[#allocation2 + $0x8] sm:$0xff] %vm782, %v780
    // Predicated region
    $region22: #{fragment_ecfp_encoder.1} parent=1 // pred_check
      _
    $region23: #{fragment_ecfp_encoder.1} parent=1 // pred_check_branch
      %786 = sbr.rel (0) target = $region25
    $region24: #{fragment_ecfp_encoder.1} parent=1 // pred_region
      %788 = vsyncadd [#allocation3], 0
      %s789 = sshll.u32 [#allocation2], 4
      %s790 = int_to_ptr.vmem [resolvable:$true] %s789
      %s791 = sshll.u32 %s5, 4
      %s792 = int_to_ptr.hbm [resolvable:$true] %s791
      %797 = dma.vmem_to_hbm [thread:$0]  %s790, 256, %s792, [#allocation3], 128, 128, 8
    $region25: #{fragment_ecfp_encoder.1} parent=1 // pred_fallthru
      _
    // Predicated region
    $region26: #{fragment_ecfp_encoder.1} parent=1 // pred_check
      _
    $region27: #{fragment_ecfp_encoder.1} parent=1 // pred_check_branch
      %799 = sbr.rel (0) target = $region29
    $region28: #{fragment_ecfp_encoder.1} parent=1 // pred_region
      %801 = dma.done [#allocation3], 256
    $region29: #{fragment_ecfp_encoder.1} parent=1 // pred_fallthru
      _
    %802 = vsyncpa [#allocation3], 1

</llo_original>
